<compile_context>
chip_gen: v7x
topology: tpu7x:2x2x1
jax: 0.10.0
libtpu: 0.0.40
codegen_flags: <defaults>
</compile_context>

<pallas_src>
import math
import functools

import jax
import jax.numpy as jnp
from jax.experimental import pallas as pl
from jax.experimental.pallas import tpu as pltpu

LANE = 128
SUBLANE = 8

_COMPILER_PARAMS = pltpu.CompilerParams(vmem_limit_bytes=32 * 1024 * 1024)


def _round_up(v, m):
    return ((v + m - 1) // m) * m


def _pad2(a, rows, cols):
    return jnp.pad(a, ((0, rows - a.shape[0]), (0, cols - a.shape[1])))


def _full_spec(shape):
    # whole-array block (block_shape == array shape satisfies the (8,128) rule)
    return pl.BlockSpec(shape, lambda: (0,) * len(shape))


# ----------------------------------------------------------------------------
# Fused kernels (one kernel == the WHOLE KRLModule forward for that mode)
# ----------------------------------------------------------------------------
def _ffn_fused_kernel(relus, x_ref, w1_ref, b1_ref, o_ref):
    x = x_ref[...]
    for l, relu in enumerate(relus):
        x = jnp.dot(x, w1_ref[l], preferred_element_type=jnp.float32) + b1_ref[l]
        if relu:
            x = jnp.maximum(x, 0.0)
    o_ref[...] = x


def _gcn_fused_kernel(relus, x_ref, adj_ref, w1_ref, b1_ref, o_ref):
    adj = adj_ref[...]
    x = x_ref[...]
    for l, relu in enumerate(relus):
        xw = jnp.dot(x, w1_ref[l], preferred_element_type=jnp.float32)
        x = jnp.dot(adj, xw, preferred_element_type=jnp.float32) + b1_ref[l]
        if relu:
            x = jnp.maximum(x, 0.0)
    o_ref[...] = x


def _cola_fused_kernel(layer_cfg, lam, x_ref, adj_ref, w1m_ref, b1w_ref,
                       w2_ref, b2_ref, o_ref):
    # layer_cfg: static tuple of (true_cin, relu) per layer
    adj = adj_ref[...]
    x1 = x_ref[...]
    x2 = x1
    cp = x1.shape[1]                       # padded channel width (multiple of 128)
    for l, (cin, relu) in enumerate(layer_cfg):
        # wide dot 1: xa[:, :cp] = x1 @ w1 + b1 ; xa[:, cp:] = x1 @ wm
        xa = jnp.dot(x1, w1m_ref[l], preferred_element_type=jnp.float32) + b1w_ref[l]
        # wide dot 2: yb = x2 @ w2 + b2
        yb = jnp.dot(x2, w2_ref[l], preferred_element_type=jnp.float32) + b2_ref[l]
        # wide dot 3: adj @ [x1w1+b1 | x1wm | x2w2+b2]
        cat = jnp.concatenate([xa, yb], axis=1)               # (N, 3*cp)
        ac = jnp.dot(adj, cat, preferred_element_type=jnp.float32)
        mid1 = ac[:, :cp]                                     # adj @ (x1 w1 + b1)
        a_x1wm = ac[:, cp:2 * cp]                             # (adj @ x1) @ wm
        a_yb = ac[:, 2 * cp:]                                 # adj @ (x2 w2 + b2)

        # gate: scale applied once to the (N,1) row-sum (true cin, not padded)
        mu = jax.nn.sigmoid(
            jnp.sum(a_x1wm * x1, axis=1, keepdims=True) * (1.0 / math.sqrt(cin)))

        mid2 = yb - a_yb
        if relu:
            mid1 = jnp.maximum(mid1, 0.0)
            mid2 = jnp.maximum(mid2, 0.0)
        x1 = mid1 + lam * (1.0 - mu) * mid2
        x2 = mid2 + mu * mid1
    o_ref[...] = x1


# ----------------------------------------------------------------------------
# KRLModule equivalent (single pallas_call per forward)
# ----------------------------------------------------------------------------
class KRLModulePallas:
    def __init__(self, mode, channels, adj, key):
        self.mode = mode
        self.adj = adj
        self.lam = 0.01
        self.channels = list(channels)
        self.params = []            # raw (unpadded) params, per layer
        self.relus = []
        n_layers = len(channels) - 1
        for i in range(n_layers):
            cin, cout = channels[i], channels[i + 1]
            key, k1, k2, k3, k4, k5 = jax.random.split(key, 6)
            p = dict(
                w1=jax.random.normal(k1, (cin, cout), jnp.float32),
                b1=jax.random.normal(k2, (cout,), jnp.float32),
                w2=jax.random.normal(k3, (cin, cout), jnp.float32),
                b2=jax.random.normal(k4, (cout,), jnp.float32),
                wm=jax.random.normal(k5, (cin, cin), jnp.float32),
            )
            self.params.append(p)
            self.relus.append(i < n_layers - 1)   # relu=True except last layer

        # ---- pack padded / stacked parameters once -------------------------
        cp = _round_up(max(channels), LANE)       # common padded channel width
        self.cp = cp
        n = adj.shape[0]
        self.n_adj = n
        np_ = _round_up(n, SUBLANE)
        self.np_ = np_
        self.adj_p = _pad2(adj, np_, np_)

        self.w1_s = jnp.stack([_pad2(p['w1'], cp, cp) for p in self.params])
        self.b1_s = jnp.stack([_pad2(p['b1'][None, :], 1, cp) for p in self.params])

        if mode == 'CoLa':
            self.w1m_s = jnp.stack([
                jnp.concatenate([_pad2(p['w1'], cp, cp),
                                 _pad2(p['wm'], cp, cp)], axis=1)
                for p in self.params])                                  # (L, cp, 2cp)
            self.b1w_s = jnp.stack([
                jnp.concatenate([_pad2(p['b1'][None, :], 1, cp),
                                 jnp.zeros((1, cp), jnp.float32)], axis=1)
                for p in self.params])                                  # (L, 1, 2cp)
            self.w2_s = jnp.stack([_pad2(p['w2'], cp, cp) for p in self.params])
            self.b2_s = jnp.stack([_pad2(p['b2'][None, :], 1, cp) for p in self.params])

    def __call__(self, x):
        n = x.shape[0]
        cp, np_ = self.cp, self.np_
        xp = _pad2(x, np_, cp)
        cout = self.channels[-1]
        relus = tuple(self.relus)
        out_sds = jax.ShapeDtypeStruct((np_, cp), jnp.float32)
        out_spec = _full_spec((np_, cp))

        if self.mode == 'CoLa':
            layer_cfg = tuple((self.channels[i], self.relus[i])
                              for i in range(len(self.params)))
            out = pl.pallas_call(
                functools.partial(_cola_fused_kernel, layer_cfg, self.lam),
                out_shape=out_sds,
                in_specs=[_full_spec(xp.shape), _full_spec(self.adj_p.shape),
                          _full_spec(self.w1m_s.shape), _full_spec(self.b1w_s.shape),
                          _full_spec(self.w2_s.shape), _full_spec(self.b2_s.shape)],
                out_specs=out_spec,
                compiler_params=_COMPILER_PARAMS,
            )(xp, self.adj_p, self.w1m_s, self.b1w_s, self.w2_s, self.b2_s)
        elif self.mode == 'GCN':
            out = pl.pallas_call(
                functools.partial(_gcn_fused_kernel, relus),
                out_shape=out_sds,
                in_specs=[_full_spec(xp.shape), _full_spec(self.adj_p.shape),
                          _full_spec(self.w1_s.shape), _full_spec(self.b1_s.shape)],
                out_specs=out_spec,
                compiler_params=_COMPILER_PARAMS,
            )(xp, self.adj_p, self.w1_s, self.b1_s)
        else:  # 'FFN'
            out = pl.pallas_call(
                functools.partial(_ffn_fused_kernel, relus),
                out_shape=out_sds,
                in_specs=[_full_spec(xp.shape),
                          _full_spec(self.w1_s.shape), _full_spec(self.b1_s.shape)],
                out_specs=out_spec,
                compiler_params=_COMPILER_PARAMS,
            )(xp, self.w1_s, self.b1_s)

        return out[:n, :cout]


# ----------------------------------------------------------------------------
# Pure-JAX reference (mirrors the PyTorch forward, dropout == identity)
# ----------------------------------------------------------------------------
def _reference(mode, params, relus, adj, x, lam):
    if mode == 'CoLa':
        x1, x2 = x, x
        for p, relu in zip(params, relus):
            cin = p['w1'].shape[0]
            mu = jax.nn.sigmoid(
                jnp.sum((adj @ x1 @ p['wm']) * x1 / math.sqrt(cin),
                        axis=1, keepdims=True))
            mid1 = adj @ (x1 @ p['w1'] + p['b1'])
            mid2 = x2 @ p['w2'] + p['b2']
            mid2 = mid2 - adj @ mid2
            if relu:
                mid1, mid2 = jnp.maximum(mid1, 0.), jnp.maximum(mid2, 0.)
            x1, x2 = mid1 + lam * (1 - mu) * mid2, mid2 + mu * mid1
        return x1
    elif mode == 'GCN':
        for p, relu in zip(params, relus):
            x = adj @ (x @ p['w1']) + p['b1']
            if relu:
                x = jnp.maximum(x, 0.)
        return x
    else:
        for p, relu in zip(params, relus):
            x = x @ p['w1'] + p['b1']
            if relu:
                x = jnp.maximum(x, 0.)
        return x


if __name__ == "__main__":
    key = jax.random.PRNGKey(0)
    k_x, k_adj, k_params = jax.random.split(key, 3)

    N = 16                      # number of graph nodes
    channels = [32, 32, 16]     # 2 KRLConv layers: 32->32 (relu), 32->16 (no relu)

    x = jax.random.normal(k_x, (N, channels[0]), jnp.float32)
    # deterministic row-normalized adjacency
    adj_raw = jnp.abs(jax.random.normal(k_adj, (N, N), jnp.float32)) + jnp.eye(N)
    adj = adj_raw / jnp.sum(adj_raw, axis=1, keepdims=True)

    ok = True
    for mode in ('CoLa', 'GCN', 'FFN'):
        model = KRLModulePallas(mode, channels, adj, k_params)
        out = jax.block_until_ready(model(x))
        ref = _reference(mode, model.params, model.relus, adj, x, model.lam)
        ok &= out.shape == ref.shape
        ok &= bool(jnp.allclose(out, ref, rtol=2e-3, atol=2e-3))

    if ok:
        print("KERNEL_OK")
    else:
        print("MISMATCH")
</pallas_src>

<mosaic_0001>
module attributes {stable_mosaic.version = 11 : i64} {
  func.func @_cola_fused_kernel(%arg0: memref<16x128xf32, #tpu.memory_space<vmem>>, %arg1: memref<16x16xf32, #tpu.memory_space<vmem>>, %arg2: memref<2x128x256xf32, #tpu.memory_space<vmem>>, %arg3: memref<2x1x256xf32, #tpu.memory_space<vmem>>, %arg4: memref<2x128x128xf32, #tpu.memory_space<vmem>>, %arg5: memref<2x1x128xf32, #tpu.memory_space<vmem>>, %arg6: memref<16x128xf32, #tpu.memory_space<vmem>>) attributes {dimension_semantics = [], scalar_prefetch = 0 : i64, scratch_operands = 0 : i64, tpu.core_type = #tpu.core_type<tc>} {
    %c0 = arith.constant 0 : index
    %c0_0 = arith.constant 0 : index
    %0 = vector.load %arg1[%c0, %c0_0] : memref<16x16xf32, #tpu.memory_space<vmem>>, vector<16x16xf32>
    %c0_1 = arith.constant 0 : index
    %c0_2 = arith.constant 0 : index
    %1 = vector.load %arg0[%c0_1, %c0_2] : memref<16x128xf32, #tpu.memory_space<vmem>>, vector<16x128xf32>
    %c0_3 = arith.constant 0 : index
    %c0_4 = arith.constant 0 : index
    %c0_5 = arith.constant 0 : index
    %2 = vector.load %arg2[%c0_3, %c0_4, %c0_5] : memref<2x128x256xf32, #tpu.memory_space<vmem>>, vector<1x128x256xf32>
    %3 = vector.shape_cast %2 : vector<1x128x256xf32> to vector<128x256xf32>
    %cst = arith.constant dense<0.000000e+00> : vector<16x256xf32>
    %4 = tpu.matmul %1, %3, %cst {dimension_numbers = #tpu.dot_dimension_numbers<[1], [0], [0], [1], [0, 0, 1, 1], [], []>} : vector<16x128xf32>, vector<128x256xf32>, vector<16x256xf32> -> vector<16x256xf32>
    %c0_6 = arith.constant 0 : index
    %c0_7 = arith.constant 0 : index
    %c0_8 = arith.constant 0 : index
    %5 = vector.load %arg3[%c0_6, %c0_7, %c0_8] : memref<2x1x256xf32, #tpu.memory_space<vmem>>, vector<1x1x256xf32>
    %6 = vector.shape_cast %5 : vector<1x1x256xf32> to vector<1x256xf32>
    %7 = vector.broadcast %6 : vector<1x256xf32> to vector<16x256xf32>
    %8 = arith.addf %4, %7 : vector<16x256xf32>
    %c0_9 = arith.constant 0 : index
    %c0_10 = arith.constant 0 : index
    %c0_11 = arith.constant 0 : index
    %9 = vector.load %arg4[%c0_9, %c0_10, %c0_11] : memref<2x128x128xf32, #tpu.memory_space<vmem>>, vector<1x128x128xf32>
    %10 = vector.shape_cast %9 : vector<1x128x128xf32> to vector<128x128xf32>
    %cst_12 = arith.constant dense<0.000000e+00> : vector<16x128xf32>
    %11 = tpu.matmul %1, %10, %cst_12 {dimension_numbers = #tpu.dot_dimension_numbers<[1], [0], [0], [1], [0, 0, 1, 1], [], []>} : vector<16x128xf32>, vector<128x128xf32>, vector<16x128xf32> -> vector<16x128xf32>
    %c0_13 = arith.constant 0 : index
    %c0_14 = arith.constant 0 : index
    %c0_15 = arith.constant 0 : index
    %12 = vector.load %arg5[%c0_13, %c0_14, %c0_15] : memref<2x1x128xf32, #tpu.memory_space<vmem>>, vector<1x1x128xf32>
    %13 = vector.shape_cast %12 : vector<1x1x128xf32> to vector<1x128xf32>
    %14 = vector.broadcast %13 : vector<1x128xf32> to vector<16x128xf32>
    %15 = arith.addf %11, %14 : vector<16x128xf32>
    %16 = tpu.concatenate %8, %15 in 1 : vector<16x256xf32>, vector<16x128xf32> -> vector<16x384xf32>
    %cst_16 = arith.constant dense<0.000000e+00> : vector<16x384xf32>
    %17 = tpu.matmul %0, %16, %cst_16 {dimension_numbers = #tpu.dot_dimension_numbers<[1], [0], [0], [1], [0, 0, 1, 1], [], []>} : vector<16x16xf32>, vector<16x384xf32>, vector<16x384xf32> -> vector<16x384xf32>
    %18 = vector.extract_strided_slice %17 {offsets = [0, 0], sizes = [16, 128], strides = [1, 1]} : vector<16x384xf32> to vector<16x128xf32>
    %19 = vector.extract_strided_slice %17 {offsets = [0, 128], sizes = [16, 128], strides = [1, 1]} : vector<16x384xf32> to vector<16x128xf32>
    %20 = vector.extract_strided_slice %17 {offsets = [0, 256], sizes = [16, 128], strides = [1, 1]} : vector<16x384xf32> to vector<16x128xf32>
    %21 = arith.mulf %19, %1 : vector<16x128xf32>
    %cst_17 = arith.constant dense<0.000000e+00> : vector<16xf32>
    %22 = vector.multi_reduction <add>, %21, %cst_17 [1] : vector<16x128xf32> to vector<16xf32>
    %23 = vector.shape_cast %22 : vector<16xf32> to vector<16x1xf32>
    %cst_18 = arith.constant 0.176776692 : f32
    %24 = vector.broadcast %cst_18 : f32 to vector<16x1xf32>
    %25 = arith.mulf %23, %24 : vector<16x1xf32>
    %26 = arith.negf %25 : vector<16x1xf32>
    %27 = math.exp %26 : vector<16x1xf32>
    %cst_19 = arith.constant 1.000000e+00 : f32
    %28 = vector.broadcast %cst_19 : f32 to vector<16x1xf32>
    %29 = arith.addf %28, %27 : vector<16x1xf32>
    %30 = arith.divf %28, %29 : vector<16x1xf32>
    %31 = arith.subf %15, %20 : vector<16x128xf32>
    %cst_20 = arith.constant 0.000000e+00 : f32
    %32 = vector.broadcast %cst_20 : f32 to vector<16x128xf32>
    %33 = arith.maximumf %18, %32 : vector<16x128xf32>
    %cst_21 = arith.constant 0.000000e+00 : f32
    %34 = vector.broadcast %cst_21 : f32 to vector<16x128xf32>
    %35 = arith.maximumf %31, %34 : vector<16x128xf32>
    %cst_22 = arith.constant 1.000000e+00 : f32
    %36 = vector.broadcast %cst_22 : f32 to vector<16x1xf32>
    %37 = arith.subf %36, %30 : vector<16x1xf32>
    %cst_23 = arith.constant 0.00999999977 : f32
    %38 = vector.broadcast %cst_23 : f32 to vector<16x1xf32>
    %39 = arith.mulf %38, %37 : vector<16x1xf32>
    %40 = vector.broadcast %39 : vector<16x1xf32> to vector<16x128xf32>
    %41 = arith.mulf %40, %35 : vector<16x128xf32>
    %42 = arith.addf %33, %41 : vector<16x128xf32>
    %43 = vector.broadcast %30 : vector<16x1xf32> to vector<16x128xf32>
    %44 = arith.mulf %43, %33 : vector<16x128xf32>
    %45 = arith.addf %35, %44 : vector<16x128xf32>
    %c1 = arith.constant 1 : index
    %c0_24 = arith.constant 0 : index
    %c0_25 = arith.constant 0 : index
    %46 = vector.load %arg2[%c1, %c0_24, %c0_25] : memref<2x128x256xf32, #tpu.memory_space<vmem>>, vector<1x128x256xf32>
    %47 = vector.shape_cast %46 : vector<1x128x256xf32> to vector<128x256xf32>
    %cst_26 = arith.constant dense<0.000000e+00> : vector<16x256xf32>
    %48 = tpu.matmul %42, %47, %cst_26 {dimension_numbers = #tpu.dot_dimension_numbers<[1], [0], [0], [1], [0, 0, 1, 1], [], []>} : vector<16x128xf32>, vector<128x256xf32>, vector<16x256xf32> -> vector<16x256xf32>
    %c1_27 = arith.constant 1 : index
    %c0_28 = arith.constant 0 : index
    %c0_29 = arith.constant 0 : index
    %49 = vector.load %arg3[%c1_27, %c0_28, %c0_29] : memref<2x1x256xf32, #tpu.memory_space<vmem>>, vector<1x1x256xf32>
    %50 = vector.shape_cast %49 : vector<1x1x256xf32> to vector<1x256xf32>
    %51 = vector.broadcast %50 : vector<1x256xf32> to vector<16x256xf32>
    %52 = arith.addf %48, %51 : vector<16x256xf32>
    %c1_30 = arith.constant 1 : index
    %c0_31 = arith.constant 0 : index
    %c0_32 = arith.constant 0 : index
    %53 = vector.load %arg4[%c1_30, %c0_31, %c0_32] : memref<2x128x128xf32, #tpu.memory_space<vmem>>, vector<1x128x128xf32>
    %54 = vector.shape_cast %53 : vector<1x128x128xf32> to vector<128x128xf32>
    %cst_33 = arith.constant dense<0.000000e+00> : vector<16x128xf32>
    %55 = tpu.matmul %45, %54, %cst_33 {dimension_numbers = #tpu.dot_dimension_numbers<[1], [0], [0], [1], [0, 0, 1, 1], [], []>} : vector<16x128xf32>, vector<128x128xf32>, vector<16x128xf32> -> vector<16x128xf32>
    %c1_34 = arith.constant 1 : index
    %c0_35 = arith.constant 0 : index
    %c0_36 = arith.constant 0 : index
    %56 = vector.load %arg5[%c1_34, %c0_35, %c0_36] : memref<2x1x128xf32, #tpu.memory_space<vmem>>, vector<1x1x128xf32>
    %57 = vector.shape_cast %56 : vector<1x1x128xf32> to vector<1x128xf32>
    %58 = vector.broadcast %57 : vector<1x128xf32> to vector<16x128xf32>
    %59 = arith.addf %55, %58 : vector<16x128xf32>
    %60 = tpu.concatenate %52, %59 in 1 : vector<16x256xf32>, vector<16x128xf32> -> vector<16x384xf32>
    %cst_37 = arith.constant dense<0.000000e+00> : vector<16x384xf32>
    %61 = tpu.matmul %0, %60, %cst_37 {dimension_numbers = #tpu.dot_dimension_numbers<[1], [0], [0], [1], [0, 0, 1, 1], [], []>} : vector<16x16xf32>, vector<16x384xf32>, vector<16x384xf32> -> vector<16x384xf32>
    %62 = vector.extract_strided_slice %61 {offsets = [0, 0], sizes = [16, 128], strides = [1, 1]} : vector<16x384xf32> to vector<16x128xf32>
    %63 = vector.extract_strided_slice %61 {offsets = [0, 128], sizes = [16, 128], strides = [1, 1]} : vector<16x384xf32> to vector<16x128xf32>
    %64 = vector.extract_strided_slice %61 {offsets = [0, 256], sizes = [16, 128], strides = [1, 1]} : vector<16x384xf32> to vector<16x128xf32>
    %65 = arith.mulf %63, %42 : vector<16x128xf32>
    %cst_38 = arith.constant dense<0.000000e+00> : vector<16xf32>
    %66 = vector.multi_reduction <add>, %65, %cst_38 [1] : vector<16x128xf32> to vector<16xf32>
    %67 = vector.shape_cast %66 : vector<16xf32> to vector<16x1xf32>
    %cst_39 = arith.constant 0.176776692 : f32
    %68 = vector.broadcast %cst_39 : f32 to vector<16x1xf32>
    %69 = arith.mulf %67, %68 : vector<16x1xf32>
    %70 = arith.negf %69 : vector<16x1xf32>
    %71 = math.exp %70 : vector<16x1xf32>
    %cst_40 = arith.constant 1.000000e+00 : f32
    %72 = vector.broadcast %cst_40 : f32 to vector<16x1xf32>
    %73 = arith.addf %72, %71 : vector<16x1xf32>
    %74 = arith.divf %72, %73 : vector<16x1xf32>
    %75 = arith.subf %59, %64 : vector<16x128xf32>
    %cst_41 = arith.constant 1.000000e+00 : f32
    %76 = vector.broadcast %cst_41 : f32 to vector<16x1xf32>
    %77 = arith.subf %76, %74 : vector<16x1xf32>
    %cst_42 = arith.constant 0.00999999977 : f32
    %78 = vector.broadcast %cst_42 : f32 to vector<16x1xf32>
    %79 = arith.mulf %78, %77 : vector<16x1xf32>
    %80 = vector.broadcast %79 : vector<16x1xf32> to vector<16x128xf32>
    %81 = arith.mulf %80, %75 : vector<16x128xf32>
    %82 = arith.addf %62, %81 : vector<16x128xf32>
    %c0_43 = arith.constant 0 : index
    %c0_44 = arith.constant 0 : index
    %83 = vector.load %arg6[%c0_43, %c0_44] : memref<16x128xf32, #tpu.memory_space<vmem>>, vector<16x128xf32>
    tpu.vector_store %arg6[%c0_43, %c0_44], %82 {strides = array<i32>} : memref<16x128xf32, #tpu.memory_space<vmem>>, vector<16x128xf32>,
    return
  }
}

</mosaic_0001>

<llo_original>
// kernel: tpu_custom_call.1
$region0: #{tpu_custom_call.1}
  #allocation0 [shape = 'u32[]', space=smem, size = 0x4, offset = 0x4, fixed_abs, tag = 'smem constant byte address 0x4 - core index']
  #allocation1 [shape = 'u32[144,128]{1,0:T(1,128)}', space=vmem, size = 0x12000, scoped, tag = 'internal scratch']
  %s0 = inlined_call_operand.hbm [shape: f32[16,128], index: 0, kind: input, shape index: {}]
  %s1 = inlined_call_operand.hbm [shape: f32[16,16], index: 1, kind: input, shape index: {}]
  %s2 = inlined_call_operand.hbm [shape: f32[2,128,256], index: 2, kind: input, shape index: {}]
  %s3 = inlined_call_operand.vmem [shape: f32[2,1,256], index: 3, kind: input, shape index: {}]
  %s4 = inlined_call_operand.hbm [shape: f32[2,128,128], index: 4, kind: input, shape index: {}]
  %s5 = inlined_call_operand.vmem [shape: f32[2,1,128], index: 5, kind: input, shape index: {}]
  %s6 = inlined_call_operand.hbm [shape: f32[16,128], index: 6, kind: output, shape index: {}]
  %s7 = sld [smem:[#allocation0]]
  $region50: #{tpu_custom_call.1} parent=0
    _
  %s9 = ssub.s32 1, %s7
  %s10 = scalar_select 0, %s9, %s7
  $region1: #{tpu_custom_call.1} parent=0
    #allocation2 [shape = 'u8[8192]{0}', space=vmem, size = 0x2000, scoped, tag = 'input window, operand 0, single buffered']
    #allocation3 [shape = 's32[1]{0}', space=sflag, size = 0x4, scoped, tag = 'scoped memory for tpu_custom_call.1']
    #allocation4 [shape = 's32[1]{0}', space=sflag, size = 0x4, scoped, tag = 'scoped memory for tpu_custom_call.1']
    #allocation5 [shape = 'u8[8192]{0}', space=vmem, size = 0x2000, scoped, tag = 'input window, operand 1, single buffered']
    #allocation6 [shape = 's32[1]{0}', space=sflag, size = 0x4, scoped, tag = 'scoped memory for tpu_custom_call.1']
    #allocation7 [shape = 'u8[262144]{0}', space=vmem, size = 0x40000, scoped, tag = 'input window, operand 2, single buffered']
    #allocation8 [shape = 'u8[131072]{0}', space=vmem, size = 0x20000, scoped, tag = 'input window, operand 4, single buffered']
    #allocation9 [shape = 's32[1]{0}', space=sflag, size = 0x4, scoped, tag = 'scoped memory for tpu_custom_call.1']
    #allocation10 [shape = 'u8[8192]{0}', space=vmem, size = 0x2000, scoped, tag = 'output window, operand 0, single buffered']
    %11 = vsyncpa [#allocation3], 0
    %12 = vsyncpa [#allocation6], 0
    %13 = vsyncpa [#allocation9], 0
    %14 = vsyncpa [#allocation4], 0
    // Predicated region
    $region2: #{tpu_custom_call.1} parent=1 // pred_check
      _
    $region3: #{tpu_custom_call.1} parent=1 // pred_check_branch
      %16 = sbr.rel (0) target = $region5
    $region4: #{tpu_custom_call.1} parent=1 // pred_region
      %s18 = ssub.s32 256, 256
      %19 = vsyncadd [#allocation3], %s18
      %s20 = sshll.u32 [#allocation2], 4
      %s21 = int_to_ptr.vmem [resolvable:$true] %s20
      %26 = dma.hbm_to_vmem [thread:$0]  %s0, 256, %s21, [#allocation3], 128, 128, 8
    $region5: #{tpu_custom_call.1} parent=1 // pred_fallthru
      _
    // Predicated region
    $region6: #{tpu_custom_call.1} parent=1 // pred_check
      _
    $region7: #{tpu_custom_call.1} parent=1 // pred_check_branch
      %28 = sbr.rel (0) target = $region9
    $region8: #{tpu_custom_call.1} parent=1 // pred_region
      %s30 = ssub.s32 256, 256
      %31 = vsyncadd [#allocation6], %s30
      %s32 = sshll.u32 [#allocation5], 4
      %s33 = int_to_ptr.vmem [resolvable:$true] %s32
      %38 = dma.hbm_to_vmem [thread:$0]  %s1, 256, %s33, [#allocation6], 128, 128, 8
    $region9: #{tpu_custom_call.1} parent=1 // pred_fallthru
      _
    // Predicated region
    $region10: #{tpu_custom_call.1} parent=1 // pred_check
      _
    $region11: #{tpu_custom_call.1} parent=1 // pred_check_branch
      %40 = sbr.rel (0) target = $region13
    $region12: #{tpu_custom_call.1} parent=1 // pred_region
      %s42 = ssub.s32 8192, 8192
      %43 = vsyncadd [#allocation6], %s42
      %s44 = sshll.u32 [#allocation7], 4
      %s45 = int_to_ptr.vmem [resolvable:$true] %s44
      %50 = dma.hbm_to_vmem [thread:$0]  %s2, 8192, %s45, [#allocation6], 256, 256, 16
    $region13: #{tpu_custom_call.1} parent=1 // pred_fallthru
      _
    // Predicated region
    $region14: #{tpu_custom_call.1} parent=1 // pred_check
      _
    $region15: #{tpu_custom_call.1} parent=1 // pred_check_branch
      %52 = sbr.rel (0) target = $region17
    $region16: #{tpu_custom_call.1} parent=1 // pred_region
      _
    $region17: #{tpu_custom_call.1} parent=1 // pred_fallthru
      _
    // Predicated region
    $region18: #{tpu_custom_call.1} parent=1 // pred_check
      _
    $region19: #{tpu_custom_call.1} parent=1 // pred_check_branch
      %54 = sbr.rel (0) target = $region21
    $region20: #{tpu_custom_call.1} parent=1 // pred_region
      %s56 = ssub.s32 4096, 4096
      %57 = vsyncadd [#allocation9], %s56
      %s58 = sshll.u32 [#allocation8], 4
      %s59 = int_to_ptr.vmem [resolvable:$true] %s58
      %64 = dma.hbm_to_vmem [thread:$0]  %s4, 4096, %s59, [#allocation9], 128, 128, 8
    $region21: #{tpu_custom_call.1} parent=1 // pred_fallthru
      _
    // Predicated region
    $region22: #{tpu_custom_call.1} parent=1 // pred_check
      _
    $region23: #{tpu_custom_call.1} parent=1 // pred_check_branch
      %66 = sbr.rel (0) target = $region25
    $region24: #{tpu_custom_call.1} parent=1 // pred_region
      _
    $region25: #{tpu_custom_call.1} parent=1 // pred_fallthru
      _
    // Predicated region
    $region26: #{tpu_custom_call.1} parent=1 // pred_check
      _
    $region27: #{tpu_custom_call.1} parent=1 // pred_check_branch
      %68 = sbr.rel (0) target = $region29
    $region28: #{tpu_custom_call.1} parent=1 // pred_region
      %69 = dma.done [#allocation3], 256
    $region29: #{tpu_custom_call.1} parent=1 // pred_fallthru
      _
    // Predicated region
    $region30: #{tpu_custom_call.1} parent=1 // pred_check
      _
    $region31: #{tpu_custom_call.1} parent=1 // pred_check_branch
      %71 = sbr.rel (0) target = $region33
    $region32: #{tpu_custom_call.1} parent=1 // pred_region
      %72 = dma.done [#allocation6], 256
    $region33: #{tpu_custom_call.1} parent=1 // pred_fallthru
      _
    // Predicated region
    $region34: #{tpu_custom_call.1} parent=1 // pred_check
      _
    $region35: #{tpu_custom_call.1} parent=1 // pred_check_branch
      %74 = sbr.rel (0) target = $region37
    $region36: #{tpu_custom_call.1} parent=1 // pred_region
      %75 = dma.done [#allocation6], 8192
    $region37: #{tpu_custom_call.1} parent=1 // pred_fallthru
      _
    // Predicated region
    $region38: #{tpu_custom_call.1} parent=1 // pred_check
      _
    $region39: #{tpu_custom_call.1} parent=1 // pred_check_branch
      %77 = sbr.rel (0) target = $region41
    $region40: #{tpu_custom_call.1} parent=1 // pred_region
      %78 = dma.done [#allocation9], 4096
    $region41: #{tpu_custom_call.1} parent=1 // pred_fallthru
      _
    %v79 = vld [vmem:[#allocation5] sm:$0xff]
    %v80 = vld [vmem:[#allocation5 + $0x8] sm:$0xff]
    %v81 = vld [vmem:[#allocation2] sm:$0xff]
    %v82 = vld [vmem:[#allocation2 + $0x8] sm:$0xff]
    %v83 = vld [vmem:[#allocation7] sm:$0xff]
    %v84 = vld [vmem:[#allocation7 + $0x8] sm:$0xff]
    %v85 = vld [vmem:[#allocation7 + $0x10] sm:$0xff]
    %v86 = vld [vmem:[#allocation7 + $0x18] sm:$0xff]
    %v87 = vld [vmem:[#allocation7 + $0x20] sm:$0xff]
    %v88 = vld [vmem:[#allocation7 + $0x28] sm:$0xff]
    %v89 = vld [vmem:[#allocation7 + $0x30] sm:$0xff]
    %v90 = vld [vmem:[#allocation7 + $0x38] sm:$0xff]
    %v91 = vld [vmem:[#allocation7 + $0x40] sm:$0xff]
    %v92 = vld [vmem:[#allocation7 + $0x48] sm:$0xff]
    %v93 = vld [vmem:[#allocation7 + $0x50] sm:$0xff]
    %v94 = vld [vmem:[#allocation7 + $0x58] sm:$0xff]
    %v95 = vld [vmem:[#allocation7 + $0x60] sm:$0xff]
    %v96 = vld [vmem:[#allocation7 + $0x68] sm:$0xff]
    %v97 = vld [vmem:[#allocation7 + $0x70] sm:$0xff]
    %v98 = vld [vmem:[#allocation7 + $0x78] sm:$0xff]
    %v99 = vld [vmem:[#allocation7 + $0x80] sm:$0xff]
    %v100 = vld [vmem:[#allocation7 + $0x88] sm:$0xff]
    %v101 = vld [vmem:[#allocation7 + $0x90] sm:$0xff]
    %v102 = vld [vmem:[#allocation7 + $0x98] sm:$0xff]
    %v103 = vld [vmem:[#allocation7 + $0xa0] sm:$0xff]
    %v104 = vld [vmem:[#allocation7 + $0xa8] sm:$0xff]
    %v105 = vld [vmem:[#allocation7 + $0xb0] sm:$0xff]
    %v106 = vld [vmem:[#allocation7 + $0xb8] sm:$0xff]
    %v107 = vld [vmem:[#allocation7 + $0xc0] sm:$0xff]
    %v108 = vld [vmem:[#allocation7 + $0xc8] sm:$0xff]
    %v109 = vld [vmem:[#allocation7 + $0xd0] sm:$0xff]
    %v110 = vld [vmem:[#allocation7 + $0xd8] sm:$0xff]
    %v111 = vld [vmem:[#allocation7 + $0xe0] sm:$0xff]
    %v112 = vld [vmem:[#allocation7 + $0xe8] sm:$0xff]
    %v113 = vld [vmem:[#allocation7 + $0xf0] sm:$0xff]
    %v114 = vld [vmem:[#allocation7 + $0xf8] sm:$0xff]
    %v115 = vld [vmem:[%s3] sm:$0x3]
    %v117 = vlaneseq
    %v118 = vshrl.u32 %v117, 7
    %v119 = vsub.s32 0, %v118
    %v120 = vrot.slane %v115, %v119
    %v121 = vlaneseq
    %v122 = vshrl.u32 %v121, 7
    %v123 = vsub.s32 1, %v122
    %v124 = vrot.slane %v115, %v123
    %127 = vmatprep.subr.mxu0 %v84
    %128 = vmatpush1.msra.mxu0 %v83
    %129 = vmatprep.subr.mxu0 %v86
    %130 = vmatpush1.msra.mxu0 %v85
    %131 = vmatprep.subr.mxu0 %v88
    %132 = vmatpush1.msra.mxu0 %v87
    %133 = vmatprep.subr.mxu0 %v90
    %134 = vmatpush1.msra.mxu0 %v89
    %135 = vmatprep.subr.mxu0 %v92
    %136 = vmatpush1.msra.mxu0 %v91
    %137 = vmatprep.subr.mxu0 %v94
    %138 = vmatpush1.msra.mxu0 %v93
    %139 = vmatprep.subr.mxu0 %v96
    %140 = vmatpush1.msra.mxu0 %v95
    %141 = vmatprep.subr.mxu0 %v98
    %142 = vmatpush1.msra.mxu0 %v97
    %143 = vmatprep.subr.mxu0 %v100
    %144 = vmatpush1.msra.mxu0 %v99
    %145 = vmatprep.subr.mxu0 %v102
    %146 = vmatpush1.msra.mxu0 %v101
    %147 = vmatprep.subr.mxu0 %v104
    %148 = vmatpush1.msra.mxu0 %v103
    %149 = vmatprep.subr.mxu0 %v106
    %150 = vmatpush1.msra.mxu0 %v105
    %151 = vmatprep.subr.mxu0 %v108
    %152 = vmatpush1.msra.mxu0 %v107
    %153 = vmatprep.subr.mxu0 %v110
    %154 = vmatpush1.msra.mxu0 %v109
    %155 = vmatprep.subr.mxu0 %v112
    %156 = vmatpush1.msra.mxu0 %v111
    %157 = vmatprep.subr.mxu0 %v114
    %158 = vmatpush1.msra.mxu0 %v113
    %159 = vmatprep.subr.mxu0 0.0
    %160 = vmatpush1.msra.mxu0 0.0
    %161 = vmatprep.subr.mxu0 0.0
    %162 = vmatpush1.msra.mxu0 0.0
    %163 = vmatprep.subr.mxu0 0.0
    %164 = vmatpush1.msra.mxu0 0.0
    %165 = vmatprep.subr.mxu0 0.0
    %166 = vmatpush1.msra.mxu0 0.0
    %167 = vmatprep.subr.mxu0 0.0
    %168 = vmatpush1.msra.mxu0 0.0
    %169 = vmatprep.subr.mxu0 0.0
    %170 = vmatpush1.msra.mxu0 0.0
    %171 = vmatprep.subr.mxu0 0.0
    %172 = vmatpush1.msra.mxu0 0.0
    %173 = vmatprep.subr.mxu0 0.0
    %174 = vmatpush1.msra.mxu0 0.0
    %175 = vmatprep.subr.mxu0 0.0
    %176 = vmatpush1.msra.mxu0 0.0
    %177 = vmatprep.subr.mxu0 0.0
    %178 = vmatpush1.msra.mxu0 0.0
    %179 = vmatprep.subr.mxu0 0.0
    %180 = vmatpush1.msra.mxu0 0.0
    %181 = vmatprep.subr.mxu0 0.0
    %182 = vmatpush1.msra.mxu0 0.0
    %183 = vmatprep.subr.mxu0 0.0
    %184 = vmatpush1.msra.mxu0 0.0
    %185 = vmatprep.subr.mxu0 0.0
    %186 = vmatpush1.msra.mxu0 0.0
    %187 = vmatprep.subr.mxu0 0.0
    %188 = vmatpush1.msra.mxu0 0.0
    %189 = vmatprep.subr.mxu0 0.0
    %190 = vmatpush1.msra.mxu0 0.0
    %191 = vmatprep.mubr.f32.mxu0 0.0
    %192 = vmatmul.mubr.f32.gmra.mrb[0].mxu0 %v81
    %v193 = vpop.f32.mrb[0].mxu0
    %v194 = vadd.f32 %v120, %v193
    %v195 = vpop.f32.mrb[0].mxu0
    %v196 = vadd.f32 %v124, %v195
    %197 = vmatprep.mubr.f32.mxu0 0.0
    %198 = vmatmul.mubr.f32.gmra.mrb[0].mxu0 %v82
    %v199 = vpop.f32.mrb[0].mxu0
    %v200 = vadd.f32 %v120, %v199
    %v201 = vpop.f32.mrb[0].mxu0
    %v202 = vadd.f32 %v124, %v201
    %203 = vdwg.mxu0
    %v204 = vld [vmem:[#allocation8] sm:$0xff]
    %v205 = vld [vmem:[#allocation8 + $0x8] sm:$0xff]
    %v206 = vld [vmem:[#allocation8 + $0x10] sm:$0xff]
    %v207 = vld [vmem:[#allocation8 + $0x18] sm:$0xff]
    %v208 = vld [vmem:[#allocation8 + $0x20] sm:$0xff]
    %v209 = vld [vmem:[#allocation8 + $0x28] sm:$0xff]
    %v210 = vld [vmem:[#allocation8 + $0x30] sm:$0xff]
    %v211 = vld [vmem:[#allocation8 + $0x38] sm:$0xff]
    %v212 = vld [vmem:[#allocation8 + $0x40] sm:$0xff]
    %v213 = vld [vmem:[#allocation8 + $0x48] sm:$0xff]
    %v214 = vld [vmem:[#allocation8 + $0x50] sm:$0xff]
    %v215 = vld [vmem:[#allocation8 + $0x58] sm:$0xff]
    %v216 = vld [vmem:[#allocation8 + $0x60] sm:$0xff]
    %v217 = vld [vmem:[#allocation8 + $0x68] sm:$0xff]
    %v218 = vld [vmem:[#allocation8 + $0x70] sm:$0xff]
    %v219 = vld [vmem:[#allocation8 + $0x78] sm:$0xff]
    %v220 = vld [vmem:[%s5] sm:$0x1]
    %v222 = vlaneseq
    %v223 = vshrl.u32 %v222, 7
    %v224 = vsub.s32 0, %v223
    %v225 = vrot.slane %v220, %v224
    %227 = vmatprep.subr.mxu0 0.0
    %228 = vmatpush1.msra.mxu0 %v204
    %229 = vmatprep.subr.mxu0 0.0
    %230 = vmatpush1.msra.mxu0 %v205
    %231 = vmatprep.subr.mxu0 0.0
    %232 = vmatpush1.msra.mxu0 %v206
    %233 = vmatprep.subr.mxu0 0.0
    %234 = vmatpush1.msra.mxu0 %v207
    %235 = vmatprep.subr.mxu0 0.0
    %236 = vmatpush1.msra.mxu0 %v208
    %237 = vmatprep.subr.mxu0 0.0
    %238 = vmatpush1.msra.mxu0 %v209
    %239 = vmatprep.subr.mxu0 0.0
    %240 = vmatpush1.msra.mxu0 %v210
    %241 = vmatprep.subr.mxu0 0.0
    %242 = vmatpush1.msra.mxu0 %v211
    %243 = vmatprep.subr.mxu0 0.0
    %244 = vmatpush1.msra.mxu0 %v212
    %245 = vmatprep.subr.mxu0 0.0
    %246 = vmatpush1.msra.mxu0 %v213
    %247 = vmatprep.subr.mxu0 0.0
    %248 = vmatpush1.msra.mxu0 %v214
    %249 = vmatprep.subr.mxu0 0.0
    %250 = vmatpush1.msra.mxu0 %v215
    %251 = vmatprep.subr.mxu0 0.0
    %252 = vmatpush1.msra.mxu0 %v216
    %253 = vmatprep.subr.mxu0 0.0
    %254 = vmatpush1.msra.mxu0 %v217
    %255 = vmatprep.subr.mxu0 0.0
    %256 = vmatpush1.msra.mxu0 %v218
    %257 = vmatprep.subr.mxu0 0.0
    %258 = vmatpush1.msra.mxu0 %v219
    %259 = vmatprep.subr.mxu0 0.0
    %260 = vmatpush1.msra.mxu0 0.0
    %261 = vmatprep.subr.mxu0 0.0
    %262 = vmatpush1.msra.mxu0 0.0
    %263 = vmatprep.subr.mxu0 0.0
    %264 = vmatpush1.msra.mxu0 0.0
    %265 = vmatprep.subr.mxu0 0.0
    %266 = vmatpush1.msra.mxu0 0.0
    %267 = vmatprep.subr.mxu0 0.0
    %268 = vmatpush1.msra.mxu0 0.0
    %269 = vmatprep.subr.mxu0 0.0
    %270 = vmatpush1.msra.mxu0 0.0
    %271 = vmatprep.subr.mxu0 0.0
    %272 = vmatpush1.msra.mxu0 0.0
    %273 = vmatprep.subr.mxu0 0.0
    %274 = vmatpush1.msra.mxu0 0.0
    %275 = vmatprep.subr.mxu0 0.0
    %276 = vmatpush1.msra.mxu0 0.0
    %277 = vmatprep.subr.mxu0 0.0
    %278 = vmatpush1.msra.mxu0 0.0
    %279 = vmatprep.subr.mxu0 0.0
    %280 = vmatpush1.msra.mxu0 0.0
    %281 = vmatprep.subr.mxu0 0.0
    %282 = vmatpush1.msra.mxu0 0.0
    %283 = vmatprep.subr.mxu0 0.0
    %284 = vmatpush1.msra.mxu0 0.0
    %285 = vmatprep.subr.mxu0 0.0
    %286 = vmatpush1.msra.mxu0 0.0
    %287 = vmatprep.subr.mxu0 0.0
    %288 = vmatpush1.msra.mxu0 0.0
    %289 = vmatprep.subr.mxu0 0.0
    %290 = vmatpush1.msra.mxu0 0.0
    %291 = vmatprep.mubr.f32.mxu0 0.0
    %292 = vmatmul.mubr.f32.gmra.mrb[0].mxu0 %v81
    %v293 = vpop.f32.mrb[0].mxu0
    %v294 = vadd.f32 %v225, %v293
    %v295 = vpop.f32.mrb[0].mxu0
    %296 = vmatprep.mubr.f32.mxu0 0.0
    %297 = vmatmul.mubr.f32.gmra.mrb[0].mxu0 %v82
    %v298 = vpop.f32.mrb[0].mxu0
    %v299 = vadd.f32 %v225, %v298
    %v300 = vpop.f32.mrb[0].mxu0
    %301 = vdwg.mxu0
    %vm302 = vcmask 130048
    %v304 = vsel %vm302, %v79, 0
    %v307 = vsel %vm302, %v80, 0
    %309 = vmatprep.subr.mxu0 %v196
    %310 = vmatpush1.msra.mxu0 %v194
    %311 = vmatprep.subr.mxu0 %v202
    %312 = vmatpush1.msra.mxu0 %v200
    %313 = vmatprep.subr.mxu0 0.0
    %314 = vmatpush1.msra.mxu0 0.0
    %315 = vmatprep.subr.mxu0 0.0
    %316 = vmatpush1.msra.mxu0 0.0
    %317 = vmatprep.subr.mxu0 0.0
    %318 = vmatpush1.msra.mxu0 0.0
    %319 = vmatprep.subr.mxu0 0.0
    %320 = vmatpush1.msra.mxu0 0.0
    %321 = vmatprep.subr.mxu0 0.0
    %322 = vmatpush1.msra.mxu0 0.0
    %323 = vmatprep.subr.mxu0 0.0
    %324 = vmatpush1.msra.mxu0 0.0
    %325 = vmatprep.subr.mxu0 0.0
    %326 = vmatpush1.msra.mxu0 0.0
    %327 = vmatprep.subr.mxu0 0.0
    %328 = vmatpush1.msra.mxu0 0.0
    %329 = vmatprep.subr.mxu0 0.0
    %330 = vmatpush1.msra.mxu0 0.0
    %331 = vmatprep.subr.mxu0 0.0
    %332 = vmatpush1.msra.mxu0 0.0
    %333 = vmatprep.subr.mxu0 0.0
    %334 = vmatpush1.msra.mxu0 0.0
    %335 = vmatprep.subr.mxu0 0.0
    %336 = vmatpush1.msra.mxu0 0.0
    %337 = vmatprep.subr.mxu0 0.0
    %338 = vmatpush1.msra.mxu0 0.0
    %339 = vmatprep.subr.mxu0 0.0
    %340 = vmatpush1.msra.mxu0 0.0
    %341 = vmatprep.subr.mxu0 0.0
    %342 = vmatpush1.msra.mxu0 0.0
    %343 = vmatprep.subr.mxu0 0.0
    %344 = vmatpush1.msra.mxu0 0.0
    %345 = vmatprep.subr.mxu0 0.0
    %346 = vmatpush1.msra.mxu0 0.0
    %347 = vmatprep.subr.mxu0 0.0
    %348 = vmatpush1.msra.mxu0 0.0
    %349 = vmatprep.subr.mxu0 0.0
    %350 = vmatpush1.msra.mxu0 0.0
    %351 = vmatprep.subr.mxu0 0.0
    %352 = vmatpush1.msra.mxu0 0.0
    %353 = vmatprep.subr.mxu0 0.0
    %354 = vmatpush1.msra.mxu0 0.0
    %355 = vmatprep.subr.mxu0 0.0
    %356 = vmatpush1.msra.mxu0 0.0
    %357 = vmatprep.subr.mxu0 0.0
    %358 = vmatpush1.msra.mxu0 0.0
    %359 = vmatprep.subr.mxu0 0.0
    %360 = vmatpush1.msra.mxu0 0.0
    %361 = vmatprep.subr.mxu0 0.0
    %362 = vmatpush1.msra.mxu0 0.0
    %363 = vmatprep.subr.mxu0 0.0
    %364 = vmatpush1.msra.mxu0 0.0
    %365 = vmatprep.subr.mxu0 0.0
    %366 = vmatpush1.msra.mxu0 0.0
    %367 = vmatprep.subr.mxu0 0.0
    %368 = vmatpush1.msra.mxu0 0.0
    %369 = vmatprep.subr.mxu0 0.0
    %370 = vmatpush1.msra.mxu0 0.0
    %371 = vmatprep.subr.mxu0 0.0
    %372 = vmatpush1.msra.mxu0 0.0
    %373 = vmatprep.mubr.f32.mxu0 0.0
    %374 = vmatmul.mubr.f32.gmra.mrb[0].mxu0 %v304
    %v375 = vpop.f32.mrb[0].mxu0
    %v376 = vadd.f32 0.0, %v375
    %v377 = vpop.f32.mrb[0].mxu0
    %v378 = vadd.f32 0.0, %v377
    %379 = vmatprep.mubr.f32.mxu0 0.0
    %380 = vmatmul.mubr.f32.gmra.mrb[0].mxu0 %v307
    %v381 = vpop.f32.mrb[0].mxu0
    %v382 = vadd.f32 0.0, %v381
    %v383 = vpop.f32.mrb[0].mxu0
    %v384 = vadd.f32 0.0, %v383
    %385 = vdwg.mxu0
    %386 = vmatprep.subr.mxu0 0.0
    %387 = vmatpush1.msra.mxu0 %v294
    %388 = vmatprep.subr.mxu0 0.0
    %389 = vmatpush1.msra.mxu0 %v299
    %390 = vmatprep.subr.mxu0 0.0
    %391 = vmatpush1.msra.mxu0 0.0
    %392 = vmatprep.subr.mxu0 0.0
    %393 = vmatpush1.msra.mxu0 0.0
    %394 = vmatprep.subr.mxu0 0.0
    %395 = vmatpush1.msra.mxu0 0.0
    %396 = vmatprep.subr.mxu0 0.0
    %397 = vmatpush1.msra.mxu0 0.0
    %398 = vmatprep.subr.mxu0 0.0
    %399 = vmatpush1.msra.mxu0 0.0
    %400 = vmatprep.subr.mxu0 0.0
    %401 = vmatpush1.msra.mxu0 0.0
    %402 = vmatprep.subr.mxu0 0.0
    %403 = vmatpush1.msra.mxu0 0.0
    %404 = vmatprep.subr.mxu0 0.0
    %405 = vmatpush1.msra.mxu0 0.0
    %406 = vmatprep.subr.mxu0 0.0
    %407 = vmatpush1.msra.mxu0 0.0
    %408 = vmatprep.subr.mxu0 0.0
    %409 = vmatpush1.msra.mxu0 0.0
    %410 = vmatprep.subr.mxu0 0.0
    %411 = vmatpush1.msra.mxu0 0.0
    %412 = vmatprep.subr.mxu0 0.0
    %413 = vmatpush1.msra.mxu0 0.0
    %414 = vmatprep.subr.mxu0 0.0
    %415 = vmatpush1.msra.mxu0 0.0
    %416 = vmatprep.subr.mxu0 0.0
    %417 = vmatpush1.msra.mxu0 0.0
    %418 = vmatprep.subr.mxu0 0.0
    %419 = vmatpush1.msra.mxu0 0.0
    %420 = vmatprep.subr.mxu0 0.0
    %421 = vmatpush1.msra.mxu0 0.0
    %422 = vmatprep.subr.mxu0 0.0
    %423 = vmatpush1.msra.mxu0 0.0
    %424 = vmatprep.subr.mxu0 0.0
    %425 = vmatpush1.msra.mxu0 0.0
    %426 = vmatprep.subr.mxu0 0.0
    %427 = vmatpush1.msra.mxu0 0.0
    %428 = vmatprep.subr.mxu0 0.0
    %429 = vmatpush1.msra.mxu0 0.0
    %430 = vmatprep.subr.mxu0 0.0
    %431 = vmatpush1.msra.mxu0 0.0
    %432 = vmatprep.subr.mxu0 0.0
    %433 = vmatpush1.msra.mxu0 0.0
    %434 = vmatprep.subr.mxu0 0.0
    %435 = vmatpush1.msra.mxu0 0.0
    %436 = vmatprep.subr.mxu0 0.0
    %437 = vmatpush1.msra.mxu0 0.0
    %438 = vmatprep.subr.mxu0 0.0
    %439 = vmatpush1.msra.mxu0 0.0
    %440 = vmatprep.subr.mxu0 0.0
    %441 = vmatpush1.msra.mxu0 0.0
    %442 = vmatprep.subr.mxu0 0.0
    %443 = vmatpush1.msra.mxu0 0.0
    %444 = vmatprep.subr.mxu0 0.0
    %445 = vmatpush1.msra.mxu0 0.0
    %446 = vmatprep.subr.mxu0 0.0
    %447 = vmatpush1.msra.mxu0 0.0
    %448 = vmatprep.subr.mxu0 0.0
    %449 = vmatpush1.msra.mxu0 0.0
    %450 = vmatprep.mubr.f32.mxu0 0.0
    %451 = vmatmul.mubr.f32.gmra.mrb[0].mxu0 %v304
    %v452 = vpop.f32.mrb[0].mxu0
    %v453 = vadd.f32 0.0, %v452
    %v454 = vpop.f32.mrb[0].mxu0
    %455 = vmatprep.mubr.f32.mxu0 0.0
    %456 = vmatmul.mubr.f32.gmra.mrb[0].mxu0 %v307
    %v457 = vpop.f32.mrb[0].mxu0
    %v458 = vadd.f32 0.0, %v457
    %v459 = vpop.f32.mrb[0].mxu0
    %460 = vdwg.mxu0
    %v461 = vmul.f32 %v378, %v81
    %v462 = vmul.f32 %v384, %v82
    %463 = vadd.xlane.f32.xlu0 %v461
    %v464 = vpop.xlane.xlu0 %463
    %465 = vadd.xlane.f32.xlu0 %v462
    %v466 = vpop.xlane.xlu0 %465
    %v467 = vmul.f32 %v464, 0.17677669
    %v468 = vmul.f32 %v466, 0.17677669
    %v469 = vxor.u32 %v467, 2147483648
    %v470 = vxor.u32 %v468, 2147483648
    %v471 = vmul.f32 %v469, 1.442695
    %v472 = vpow.pop %v471
    %v473 = vmul.f32 %v470, 1.442695
    %v474 = vpow.pop %v473
    %v475 = vadd.f32 %v472, 1.0
    %v476 = vadd.f32 %v474, 1.0
    %v477 = vrcp.pop %v475
    %v478 = vmul.f32 1.0, %v477
    %v479 = vrcp.pop %v476
    %v480 = vmul.f32 1.0, %v479
    %v481 = vsub.f32 %v294, %v453
    %v482 = vsub.f32 %v299, %v458
    %v483 = vmax.f32 %v376, 0.0
    %v484 = vmax.f32 %v382, 0.0
    %v485 = vmax.f32 %v481, 0.0
    %v486 = vmax.f32 %v482, 0.0
    %v487 = vsub.f32 1.0, %v478
    %v488 = vsub.f32 1.0, %v480
    %v489 = vmul.f32 %v487, 0.01
    %v490 = vmul.f32 %v488, 0.01
    %v491 = vmul.f32 %v489, %v485
    %v492 = vmul.f32 %v490, %v486
    %v493 = vadd.f32 %v483, %v491
    %v494 = vadd.f32 %v484, %v492
    %v495 = vmul.f32 %v478, %v483
    %v496 = vmul.f32 %v480, %v484
    %v497 = vadd.f32 %v485, %v495
    %v498 = vadd.f32 %v486, %v496
    %s499 = scalar_lea.vmem [#allocation7], 256
    %v500 = vld [vmem:[%s499] sm:$0xff]
    %v501 = vld [vmem:[%s499 + $0x8] sm:$0xff]
    %v502 = vld [vmem:[%s499 + $0x10] sm:$0xff]
    %v503 = vld [vmem:[%s499 + $0x18] sm:$0xff]
    %v504 = vld [vmem:[%s499 + $0x20] sm:$0xff]
    %v505 = vld [vmem:[%s499 + $0x28] sm:$0xff]
    %v506 = vld [vmem:[%s499 + $0x30] sm:$0xff]
    %v507 = vld [vmem:[%s499 + $0x38] sm:$0xff]
    %v508 = vld [vmem:[%s499 + $0x40] sm:$0xff]
    %v509 = vld [vmem:[%s499 + $0x48] sm:$0xff]
    %v510 = vld [vmem:[%s499 + $0x50] sm:$0xff]
    %v511 = vld [vmem:[%s499 + $0x58] sm:$0xff]
    %v512 = vld [vmem:[%s499 + $0x60] sm:$0xff]
    %v513 = vld [vmem:[%s499 + $0x68] sm:$0xff]
    %v514 = vld [vmem:[%s499 + $0x70] sm:$0xff]
    %v515 = vld [vmem:[%s499 + $0x78] sm:$0xff]
    %v516 = vld [vmem:[%s499 + $0x80] sm:$0xff]
    %v517 = vld [vmem:[%s499 + $0x88] sm:$0xff]
    %v518 = vld [vmem:[%s499 + $0x90] sm:$0xff]
    %v519 = vld [vmem:[%s499 + $0x98] sm:$0xff]
    %v520 = vld [vmem:[%s499 + $0xa0] sm:$0xff]
    %v521 = vld [vmem:[%s499 + $0xa8] sm:$0xff]
    %v522 = vld [vmem:[%s499 + $0xb0] sm:$0xff]
    %v523 = vld [vmem:[%s499 + $0xb8] sm:$0xff]
    %v524 = vld [vmem:[%s499 + $0xc0] sm:$0xff]
    %v525 = vld [vmem:[%s499 + $0xc8] sm:$0xff]
    %v526 = vld [vmem:[%s499 + $0xd0] sm:$0xff]
    %v527 = vld [vmem:[%s499 + $0xd8] sm:$0xff]
    %v528 = vld [vmem:[%s499 + $0xe0] sm:$0xff]
    %v529 = vld [vmem:[%s499 + $0xe8] sm:$0xff]
    %v530 = vld [vmem:[%s499 + $0xf0] sm:$0xff]
    %v531 = vld [vmem:[%s499 + $0xf8] sm:$0xff]
    %s532 = scalar_lea.vmem %s3, 2
    %v533 = vld [vmem:[%s532] sm:$0x3]
    %v535 = vlaneseq
    %v536 = vshrl.u32 %v535, 7
    %v537 = vsub.s32 0, %v536
    %v538 = vrot.slane %v533, %v537
    %v539 = vlaneseq
    %v540 = vshrl.u32 %v539, 7
    %v541 = vsub.s32 1, %v540
    %v542 = vrot.slane %v533, %v541
    %545 = vmatprep.subr.mxu0 %v501
    %546 = vmatpush1.msra.mxu0 %v500
    %547 = vmatprep.subr.mxu0 %v503
    %548 = vmatpush1.msra.mxu0 %v502
    %549 = vmatprep.subr.mxu0 %v505
    %550 = vmatpush1.msra.mxu0 %v504
    %551 = vmatprep.subr.mxu0 %v507
    %552 = vmatpush1.msra.mxu0 %v506
    %553 = vmatprep.subr.mxu0 %v509
    %554 = vmatpush1.msra.mxu0 %v508
    %555 = vmatprep.subr.mxu0 %v511
    %556 = vmatpush1.msra.mxu0 %v510
    %557 = vmatprep.subr.mxu0 %v513
    %558 = vmatpush1.msra.mxu0 %v512
    %559 = vmatprep.subr.mxu0 %v515
    %560 = vmatpush1.msra.mxu0 %v514
    %561 = vmatprep.subr.mxu0 %v517
    %562 = vmatpush1.msra.mxu0 %v516
    %563 = vmatprep.subr.mxu0 %v519
    %564 = vmatpush1.msra.mxu0 %v518
    %565 = vmatprep.subr.mxu0 %v521
    %566 = vmatpush1.msra.mxu0 %v520
    %567 = vmatprep.subr.mxu0 %v523
    %568 = vmatpush1.msra.mxu0 %v522
    %569 = vmatprep.subr.mxu0 %v525
    %570 = vmatpush1.msra.mxu0 %v524
    %571 = vmatprep.subr.mxu0 %v527
    %572 = vmatpush1.msra.mxu0 %v526
    %573 = vmatprep.subr.mxu0 %v529
    %574 = vmatpush1.msra.mxu0 %v528
    %575 = vmatprep.subr.mxu0 %v531
    %576 = vmatpush1.msra.mxu0 %v530
    %577 = vmatprep.subr.mxu0 0.0
    %578 = vmatpush1.msra.mxu0 0.0
    %579 = vmatprep.subr.mxu0 0.0
    %580 = vmatpush1.msra.mxu0 0.0
    %581 = vmatprep.subr.mxu0 0.0
    %582 = vmatpush1.msra.mxu0 0.0
    %583 = vmatprep.subr.mxu0 0.0
    %584 = vmatpush1.msra.mxu0 0.0
    %585 = vmatprep.subr.mxu0 0.0
    %586 = vmatpush1.msra.mxu0 0.0
    %587 = vmatprep.subr.mxu0 0.0
    %588 = vmatpush1.msra.mxu0 0.0
    %589 = vmatprep.subr.mxu0 0.0
    %590 = vmatpush1.msra.mxu0 0.0
    %591 = vmatprep.subr.mxu0 0.0
    %592 = vmatpush1.msra.mxu0 0.0
    %593 = vmatprep.subr.mxu0 0.0
    %594 = vmatpush1.msra.mxu0 0.0
    %595 = vmatprep.subr.mxu0 0.0
    %596 = vmatpush1.msra.mxu0 0.0
    %597 = vmatprep.subr.mxu0 0.0
    %598 = vmatpush1.msra.mxu0 0.0
    %599 = vmatprep.subr.mxu0 0.0
    %600 = vmatpush1.msra.mxu0 0.0
    %601 = vmatprep.subr.mxu0 0.0
    %602 = vmatpush1.msra.mxu0 0.0
    %603 = vmatprep.subr.mxu0 0.0
    %604 = vmatpush1.msra.mxu0 0.0
    %605 = vmatprep.subr.mxu0 0.0
    %606 = vmatpush1.msra.mxu0 0.0
    %607 = vmatprep.subr.mxu0 0.0
    %608 = vmatpush1.msra.mxu0 0.0
    %609 = vmatprep.mubr.f32.mxu0 0.0
    %610 = vmatmul.mubr.f32.gmra.mrb[0].mxu0 %v493
    %v611 = vpop.f32.mrb[0].mxu0
    %v612 = vadd.f32 %v538, %v611
    %v613 = vpop.f32.mrb[0].mxu0
    %v614 = vadd.f32 %v542, %v613
    %615 = vmatprep.mubr.f32.mxu0 0.0
    %616 = vmatmul.mubr.f32.gmra.mrb[0].mxu0 %v494
    %v617 = vpop.f32.mrb[0].mxu0
    %v618 = vadd.f32 %v538, %v617
    %v619 = vpop.f32.mrb[0].mxu0
    %v620 = vadd.f32 %v542, %v619
    %621 = vdwg.mxu0
    %s622 = scalar_lea.vmem [#allocation8], 128
    %v623 = vld [vmem:[%s622] sm:$0xff]
    %v624 = vld [vmem:[%s622 + $0x8] sm:$0xff]
    %v625 = vld [vmem:[%s622 + $0x10] sm:$0xff]
    %v626 = vld [vmem:[%s622 + $0x18] sm:$0xff]
    %v627 = vld [vmem:[%s622 + $0x20] sm:$0xff]
    %v628 = vld [vmem:[%s622 + $0x28] sm:$0xff]
    %v629 = vld [vmem:[%s622 + $0x30] sm:$0xff]
    %v630 = vld [vmem:[%s622 + $0x38] sm:$0xff]
    %v631 = vld [vmem:[%s622 + $0x40] sm:$0xff]
    %v632 = vld [vmem:[%s622 + $0x48] sm:$0xff]
    %v633 = vld [vmem:[%s622 + $0x50] sm:$0xff]
    %v634 = vld [vmem:[%s622 + $0x58] sm:$0xff]
    %v635 = vld [vmem:[%s622 + $0x60] sm:$0xff]
    %v636 = vld [vmem:[%s622 + $0x68] sm:$0xff]
    %v637 = vld [vmem:[%s622 + $0x70] sm:$0xff]
    %v638 = vld [vmem:[%s622 + $0x78] sm:$0xff]
    %s639 = scalar_lea.vmem %s5, 1
    %v640 = vld [vmem:[%s639] sm:$0x1]
    %v642 = vlaneseq
    %v643 = vshrl.u32 %v642, 7
    %v644 = vsub.s32 0, %v643
    %v645 = vrot.slane %v640, %v644
    %647 = vmatprep.subr.mxu0 0.0
    %648 = vmatpush1.msra.mxu0 %v623
    %649 = vmatprep.subr.mxu0 0.0
    %650 = vmatpush1.msra.mxu0 %v624
    %651 = vmatprep.subr.mxu0 0.0
    %652 = vmatpush1.msra.mxu0 %v625
    %653 = vmatprep.subr.mxu0 0.0
    %654 = vmatpush1.msra.mxu0 %v626
    %655 = vmatprep.subr.mxu0 0.0
    %656 = vmatpush1.msra.mxu0 %v627
    %657 = vmatprep.subr.mxu0 0.0
    %658 = vmatpush1.msra.mxu0 %v628
    %659 = vmatprep.subr.mxu0 0.0
    %660 = vmatpush1.msra.mxu0 %v629
    %661 = vmatprep.subr.mxu0 0.0
    %662 = vmatpush1.msra.mxu0 %v630
    %663 = vmatprep.subr.mxu0 0.0
    %664 = vmatpush1.msra.mxu0 %v631
    %665 = vmatprep.subr.mxu0 0.0
    %666 = vmatpush1.msra.mxu0 %v632
    %667 = vmatprep.subr.mxu0 0.0
    %668 = vmatpush1.msra.mxu0 %v633
    %669 = vmatprep.subr.mxu0 0.0
    %670 = vmatpush1.msra.mxu0 %v634
    %671 = vmatprep.subr.mxu0 0.0
    %672 = vmatpush1.msra.mxu0 %v635
    %673 = vmatprep.subr.mxu0 0.0
    %674 = vmatpush1.msra.mxu0 %v636
    %675 = vmatprep.subr.mxu0 0.0
    %676 = vmatpush1.msra.mxu0 %v637
    %677 = vmatprep.subr.mxu0 0.0
    %678 = vmatpush1.msra.mxu0 %v638
    %679 = vmatprep.subr.mxu0 0.0
    %680 = vmatpush1.msra.mxu0 0.0
    %681 = vmatprep.subr.mxu0 0.0
    %682 = vmatpush1.msra.mxu0 0.0
    %683 = vmatprep.subr.mxu0 0.0
    %684 = vmatpush1.msra.mxu0 0.0
    %685 = vmatprep.subr.mxu0 0.0
    %686 = vmatpush1.msra.mxu0 0.0
    %687 = vmatprep.subr.mxu0 0.0
    %688 = vmatpush1.msra.mxu0 0.0
    %689 = vmatprep.subr.mxu0 0.0
    %690 = vmatpush1.msra.mxu0 0.0
    %691 = vmatprep.subr.mxu0 0.0
    %692 = vmatpush1.msra.mxu0 0.0
    %693 = vmatprep.subr.mxu0 0.0
    %694 = vmatpush1.msra.mxu0 0.0
    %695 = vmatprep.subr.mxu0 0.0
    %696 = vmatpush1.msra.mxu0 0.0
    %697 = vmatprep.subr.mxu0 0.0
    %698 = vmatpush1.msra.mxu0 0.0
    %699 = vmatprep.subr.mxu0 0.0
    %700 = vmatpush1.msra.mxu0 0.0
    %701 = vmatprep.subr.mxu0 0.0
    %702 = vmatpush1.msra.mxu0 0.0
    %703 = vmatprep.subr.mxu0 0.0
    %704 = vmatpush1.msra.mxu0 0.0
    %705 = vmatprep.subr.mxu0 0.0
    %706 = vmatpush1.msra.mxu0 0.0
    %707 = vmatprep.subr.mxu0 0.0
    %708 = vmatpush1.msra.mxu0 0.0
    %709 = vmatprep.subr.mxu0 0.0
    %710 = vmatpush1.msra.mxu0 0.0
    %711 = vmatprep.mubr.f32.mxu0 0.0
    %712 = vmatmul.mubr.f32.gmra.mrb[0].mxu0 %v497
    %v713 = vpop.f32.mrb[0].mxu0
    %v714 = vadd.f32 %v645, %v713
    %v715 = vpop.f32.mrb[0].mxu0
    %716 = vmatprep.mubr.f32.mxu0 0.0
    %717 = vmatmul.mubr.f32.gmra.mrb[0].mxu0 %v498
    %v718 = vpop.f32.mrb[0].mxu0
    %v719 = vadd.f32 %v645, %v718
    %v720 = vpop.f32.mrb[0].mxu0
    %721 = vdwg.mxu0
    %722 = vmatprep.subr.mxu0 %v614
    %723 = vmatpush1.msra.mxu0 %v612
    %724 = vmatprep.subr.mxu0 %v620
    %725 = vmatpush1.msra.mxu0 %v618
    %726 = vmatprep.subr.mxu0 0.0
    %727 = vmatpush1.msra.mxu0 0.0
    %728 = vmatprep.subr.mxu0 0.0
    %729 = vmatpush1.msra.mxu0 0.0
    %730 = vmatprep.subr.mxu0 0.0
    %731 = vmatpush1.msra.mxu0 0.0
    %732 = vmatprep.subr.mxu0 0.0
    %733 = vmatpush1.msra.mxu0 0.0
    %734 = vmatprep.subr.mxu0 0.0
    %735 = vmatpush1.msra.mxu0 0.0
    %736 = vmatprep.subr.mxu0 0.0
    %737 = vmatpush1.msra.mxu0 0.0
    %738 = vmatprep.subr.mxu0 0.0
    %739 = vmatpush1.msra.mxu0 0.0
    %740 = vmatprep.subr.mxu0 0.0
    %741 = vmatpush1.msra.mxu0 0.0
    %742 = vmatprep.subr.mxu0 0.0
    %743 = vmatpush1.msra.mxu0 0.0
    %744 = vmatprep.subr.mxu0 0.0
    %745 = vmatpush1.msra.mxu0 0.0
    %746 = vmatprep.subr.mxu0 0.0
    %747 = vmatpush1.msra.mxu0 0.0
    %748 = vmatprep.subr.mxu0 0.0
    %749 = vmatpush1.msra.mxu0 0.0
    %750 = vmatprep.subr.mxu0 0.0
    %751 = vmatpush1.msra.mxu0 0.0
    %752 = vmatprep.subr.mxu0 0.0
    %753 = vmatpush1.msra.mxu0 0.0
    %754 = vmatprep.subr.mxu0 0.0
    %755 = vmatpush1.msra.mxu0 0.0
    %756 = vmatprep.subr.mxu0 0.0
    %757 = vmatpush1.msra.mxu0 0.0
    %758 = vmatprep.subr.mxu0 0.0
    %759 = vmatpush1.msra.mxu0 0.0
    %760 = vmatprep.subr.mxu0 0.0
    %761 = vmatpush1.msra.mxu0 0.0
    %762 = vmatprep.subr.mxu0 0.0
    %763 = vmatpush1.msra.mxu0 0.0
    %764 = vmatprep.subr.mxu0 0.0
    %765 = vmatpush1.msra.mxu0 0.0
    %766 = vmatprep.subr.mxu0 0.0
    %767 = vmatpush1.msra.mxu0 0.0
    %768 = vmatprep.subr.mxu0 0.0
    %769 = vmatpush1.msra.mxu0 0.0
    %770 = vmatprep.subr.mxu0 0.0
    %771 = vmatpush1.msra.mxu0 0.0
    %772 = vmatprep.subr.mxu0 0.0
    %773 = vmatpush1.msra.mxu0 0.0
    %774 = vmatprep.subr.mxu0 0.0
    %775 = vmatpush1.msra.mxu0 0.0
    %776 = vmatprep.subr.mxu0 0.0
    %777 = vmatpush1.msra.mxu0 0.0
    %778 = vmatprep.subr.mxu0 0.0
    %779 = vmatpush1.msra.mxu0 0.0
    %780 = vmatprep.subr.mxu0 0.0
    %781 = vmatpush1.msra.mxu0 0.0
    %782 = vmatprep.subr.mxu0 0.0
    %783 = vmatpush1.msra.mxu0 0.0
    %784 = vmatprep.subr.mxu0 0.0
    %785 = vmatpush1.msra.mxu0 0.0
    %786 = vmatprep.mubr.f32.mxu0 0.0
    %787 = vmatmul.mubr.f32.gmra.mrb[0].mxu0 %v304
    %v788 = vpop.f32.mrb[0].mxu0
    %v789 = vadd.f32 0.0, %v788
    %v790 = vpop.f32.mrb[0].mxu0
    %v791 = vadd.f32 0.0, %v790
    %792 = vmatprep.mubr.f32.mxu0 0.0
    %793 = vmatmul.mubr.f32.gmra.mrb[0].mxu0 %v307
    %v794 = vpop.f32.mrb[0].mxu0
    %v795 = vadd.f32 0.0, %v794
    %v796 = vpop.f32.mrb[0].mxu0
    %v797 = vadd.f32 0.0, %v796
    %798 = vdwg.mxu0
    %799 = vmatprep.subr.mxu0 0.0
    %800 = vmatpush1.msra.mxu0 %v714
    %801 = vmatprep.subr.mxu0 0.0
    %802 = vmatpush1.msra.mxu0 %v719
    %803 = vmatprep.subr.mxu0 0.0
    %804 = vmatpush1.msra.mxu0 0.0
    %805 = vmatprep.subr.mxu0 0.0
    %806 = vmatpush1.msra.mxu0 0.0
    %807 = vmatprep.subr.mxu0 0.0
    %808 = vmatpush1.msra.mxu0 0.0
    %809 = vmatprep.subr.mxu0 0.0
    %810 = vmatpush1.msra.mxu0 0.0
    %811 = vmatprep.subr.mxu0 0.0
    %812 = vmatpush1.msra.mxu0 0.0
    %813 = vmatprep.subr.mxu0 0.0
    %814 = vmatpush1.msra.mxu0 0.0
    %815 = vmatprep.subr.mxu0 0.0
    %816 = vmatpush1.msra.mxu0 0.0
    %817 = vmatprep.subr.mxu0 0.0
    %818 = vmatpush1.msra.mxu0 0.0
    %819 = vmatprep.subr.mxu0 0.0
    %820 = vmatpush1.msra.mxu0 0.0
    %821 = vmatprep.subr.mxu0 0.0
    %822 = vmatpush1.msra.mxu0 0.0
    %823 = vmatprep.subr.mxu0 0.0
    %824 = vmatpush1.msra.mxu0 0.0
    %825 = vmatprep.subr.mxu0 0.0
    %826 = vmatpush1.msra.mxu0 0.0
    %827 = vmatprep.subr.mxu0 0.0
    %828 = vmatpush1.msra.mxu0 0.0
    %829 = vmatprep.subr.mxu0 0.0
    %830 = vmatpush1.msra.mxu0 0.0
    %831 = vmatprep.subr.mxu0 0.0
    %832 = vmatpush1.msra.mxu0 0.0
    %833 = vmatprep.subr.mxu0 0.0
    %834 = vmatpush1.msra.mxu0 0.0
    %835 = vmatprep.subr.mxu0 0.0
    %836 = vmatpush1.msra.mxu0 0.0
    %837 = vmatprep.subr.mxu0 0.0
    %838 = vmatpush1.msra.mxu0 0.0
    %839 = vmatprep.subr.mxu0 0.0
    %840 = vmatpush1.msra.mxu0 0.0
    %841 = vmatprep.subr.mxu0 0.0
    %842 = vmatpush1.msra.mxu0 0.0
    %843 = vmatprep.subr.mxu0 0.0
    %844 = vmatpush1.msra.mxu0 0.0
    %845 = vmatprep.subr.mxu0 0.0
    %846 = vmatpush1.msra.mxu0 0.0
    %847 = vmatprep.subr.mxu0 0.0
    %848 = vmatpush1.msra.mxu0 0.0
    %849 = vmatprep.subr.mxu0 0.0
    %850 = vmatpush1.msra.mxu0 0.0
    %851 = vmatprep.subr.mxu0 0.0
    %852 = vmatpush1.msra.mxu0 0.0
    %853 = vmatprep.subr.mxu0 0.0
    %854 = vmatpush1.msra.mxu0 0.0
    %855 = vmatprep.subr.mxu0 0.0
    %856 = vmatpush1.msra.mxu0 0.0
    %857 = vmatprep.subr.mxu0 0.0
    %858 = vmatpush1.msra.mxu0 0.0
    %859 = vmatprep.subr.mxu0 0.0
    %860 = vmatpush1.msra.mxu0 0.0
    %861 = vmatprep.subr.mxu0 0.0
    %862 = vmatpush1.msra.mxu0 0.0
    %863 = vmatprep.mubr.f32.mxu0 0.0
    %864 = vmatmul.mubr.f32.gmra.mrb[0].mxu0 %v304
    %v865 = vpop.f32.mrb[0].mxu0
    %v866 = vadd.f32 0.0, %v865
    %v867 = vpop.f32.mrb[0].mxu0
    %868 = vmatprep.mubr.f32.mxu0 0.0
    %869 = vmatmul.mubr.f32.gmra.mrb[0].mxu0 %v307
    %v870 = vpop.f32.mrb[0].mxu0
    %v871 = vadd.f32 0.0, %v870
    %v872 = vpop.f32.mrb[0].mxu0
    %873 = vdwg.mxu0
    %v874 = vmul.f32 %v791, %v493
    %v875 = vmul.f32 %v797, %v494
    %876 = vadd.xlane.f32.xlu0 %v874
    %v877 = vpop.xlane.xlu0 %876
    %878 = vadd.xlane.f32.xlu0 %v875
    %v879 = vpop.xlane.xlu0 %878
    %v880 = vmul.f32 %v877, 0.17677669
    %v881 = vmul.f32 %v879, 0.17677669
    %v882 = vxor.u32 %v880, 2147483648
    %v883 = vxor.u32 %v881, 2147483648
    %v884 = vmul.f32 %v882, 1.442695
    %v885 = vpow.pop %v884
    %v886 = vmul.f32 %v883, 1.442695
    %v887 = vpow.pop %v886
    %v888 = vadd.f32 %v885, 1.0
    %v889 = vadd.f32 %v887, 1.0
    %v890 = vrcp.pop %v888
    %v891 = vmul.f32 1.0, %v890
    %v892 = vrcp.pop %v889
    %v893 = vmul.f32 1.0, %v892
    %v894 = vsub.f32 %v714, %v866
    %v895 = vsub.f32 %v719, %v871
    %v896 = vsub.f32 1.0, %v891
    %v897 = vsub.f32 1.0, %v893
    %v898 = vmul.f32 %v896, 0.01
    %v899 = vmul.f32 %v897, 0.01
    %v900 = vmul.f32 %v898, %v894
    %v901 = vmul.f32 %v899, %v895
    %v902 = vadd.f32 %v789, %v900
    %v903 = vadd.f32 %v795, %v901
    %904 = vst [vmem:[#allocation10] sm:$0xff] %v902
    %905 = vst [vmem:[#allocation10 + $0x8] sm:$0xff] %v903
    // Predicated region
    $region42: #{tpu_custom_call.1} parent=1 // pred_check
      _
    $region43: #{tpu_custom_call.1} parent=1 // pred_check_branch
      %907 = sbr.rel (0) target = $region45
    $region44: #{tpu_custom_call.1} parent=1 // pred_region
      %s909 = ssub.s32 256, 256
      %910 = vsyncadd [#allocation4], %s909
      %s911 = sshll.u32 [#allocation10], 4
      %s912 = int_to_ptr.vmem [resolvable:$true] %s911
      %917 = dma.vmem_to_hbm [thread:$0]  %s912, 256, %s6, [#allocation4], 128, 128, 8
    $region45: #{tpu_custom_call.1} parent=1 // pred_fallthru
      _
    // Predicated region
    $region46: #{tpu_custom_call.1} parent=1 // pred_check
      _
    $region47: #{tpu_custom_call.1} parent=1 // pred_check_branch
      %919 = sbr.rel (0) target = $region49
    $region48: #{tpu_custom_call.1} parent=1 // pred_region
      %920 = dma.done [#allocation4], 256
    $region49: #{tpu_custom_call.1} parent=1 // pred_fallthru
      _
    %921 = vsyncpa [#allocation3], 1
    %922 = vsyncpa [#allocation6], 1
    %923 = vsyncpa [#allocation9], 1
    %924 = vsyncpa [#allocation4], 1

</llo_original>
